<compile_context>
chip_gen: v7x
topology: tpu7x:2x2x1
jax: 0.10.0
libtpu: 0.0.40
codegen_flags: <defaults>
</compile_context>

<pallas_src>
import functools

import numpy as np
import jax
import jax.numpy as jnp
from jax import lax
from jax.experimental import pallas as pl
from jax.experimental.pallas import tpu as pltpu


def _sigmoid(z):
    # sigmoid(z) = 0.5 * tanh(z/2) + 0.5  -- one EUP transcendental, no divide.
    return 0.5 * jnp.tanh(0.5 * z) + 0.5


def _cat(parts, axis):
    return parts[0] if len(parts) == 1 else jnp.concatenate(parts, axis=axis)


def _spatial_attention_kernel(x_ref, w1_ref, b1_ref, w2_ref, b2_ref,
                              m_ref, cb_ref, o_ref, *, Bt):
    # ---- global avg / max pools per batch element (C on sublanes) ----
    avg_cols, max_cols = [], []
    for b in range(Bt):
        xb = x_ref[b]                                              # (C, HW)
        avg_cols.append(jnp.mean(xb, axis=1, keepdims=True))       # (C, 1)
        max_cols.append(jnp.max(xb, axis=1, keepdims=True))        # (C, 1)
    avg = _cat(avg_cols, axis=1)                                   # (C, Bt)
    mx = _cat(max_cols, axis=1)                                    # (C, Bt)
    feat = jnp.concatenate([avg, mx], axis=0)                      # (2C, Bt)

    # ---- channel-attention MLP, batched over Bt on the MXU ----
    h = jnp.dot(w1_ref[...], feat,
                preferred_element_type=jnp.float32) + b1_ref[...]  # (Hd, Bt)
    h = jnp.maximum(h, 0.0)
    z = jnp.dot(w2_ref[...], h,
                preferred_element_type=jnp.float32) + b2_ref[...]  # (C, Bt)
    cwgt = _sigmoid(z)                                             # (C, Bt)

    # ---- channel re-weighting + spatial mean/max maps ----
    xw_list, sp_rows = [], []
    for b in range(Bt):
        xw = x_ref[b] * cwgt[:, b:b + 1]                           # (C, HW)
        xw_list.append(xw)
        avg_sp = jnp.mean(xw, axis=0, keepdims=True)               # (1, HW)
        max_sp = jnp.max(xw, axis=0, keepdims=True)                # (1, HW)
        sp_rows.append(jnp.concatenate([avg_sp, max_sp], axis=1))  # (1, 2*HW)
    sp = _cat(sp_rows, axis=0)                                     # (Bt, 2*HW)

    # ---- 7x7 conv (+bias) as one MXU matmul against precomputed M ----
    acc = jnp.dot(sp, m_ref[...],
                  preferred_element_type=jnp.float32) + cb_ref[0]  # (Bt, HW)
    swgt = _sigmoid(acc)                                           # (Bt, HW)

    for b in range(Bt):
        o_ref[b] = xw_list[b] * swgt[b:b + 1, :]


def _conv_to_matmul_matrix(cw, H, W):
    """Scatter the (1,2,7,7) conv weights into a dense (2*HW, HW) matrix so
    that out[:, p] = sum_q sp[:, q] * M[q, p] reproduces the pad-3 7x7 conv."""
    HW = H * W
    rows, cols, widx = [], [], []
    for c in range(2):
        for dy in range(-3, 4):
            for dx in range(-3, 4):
                wi = c * 49 + (dy + 3) * 7 + (dx + 3)
                for y in range(H):
                    yy = y + dy
                    if not (0 <= yy < H):
                        continue
                    for x_ in range(W):
                        xx = x_ + dx
                        if not (0 <= xx < W):
                            continue
                        rows.append(c * HW + yy * W + xx)   # input pixel
                        cols.append(y * W + x_)             # output pixel
                        widx.append(wi)
    rows = np.asarray(rows, np.int32)
    cols = np.asarray(cols, np.int32)
    widx = np.asarray(widx, np.int32)
    wflat = cw.reshape(-1).astype(jnp.float32)              # (98,)
    vals = wflat[widx]
    return jnp.zeros((2 * HW, HW), jnp.float32).at[rows, cols].add(vals)


def _choose_bt(B):
    # Prefer >=2 parallel grid steps (v7x has 2 TensorCores), batch up to 8
    # elements per step to amortize the ~0.35us fixed per-step overhead.
    for bt in (8, 4, 2, 1):
        if B % bt == 0 and (B // bt) % 2 == 0:
            return bt
    for bt in (8, 4, 2, 1):
        if B % bt == 0:
            return bt
    return 1


def spatial_attention(x, w1, b1, w2, b2, cw, cb):
    """x: NCHW float32. w1:(Hd,2C) b1:(Hd,) w2:(C,Hd) b2:(C,) cw:(1,2,7,7) cb:(1,)."""
    B, C, H, W = x.shape
    Hd = w1.shape[0]
    HW = H * W
    xf = x.reshape(B, C, HW).astype(jnp.float32)
    M = _conv_to_matmul_matrix(cw, H, W)                    # (2*HW, HW)

    Bt = _choose_bt(B)
    grid = (B // Bt,)
    kernel = functools.partial(_spatial_attention_kernel, Bt=Bt)

    out = pl.pallas_call(
        kernel,
        out_shape=jax.ShapeDtypeStruct((B, C, HW), jnp.float32),
        grid=grid,
        in_specs=[
            pl.BlockSpec((Bt, C, HW), lambda g: (g, 0, 0)),         # x
            pl.BlockSpec((Hd, 2 * C), lambda g: (0, 0)),            # W1
            pl.BlockSpec((Hd, 1), lambda g: (0, 0)),                # b1
            pl.BlockSpec((C, Hd), lambda g: (0, 0)),                # W2
            pl.BlockSpec((C, 1), lambda g: (0, 0)),                 # b2
            pl.BlockSpec((2 * HW, HW), lambda g: (0, 0)),           # conv matrix M
            pl.BlockSpec(memory_space=pltpu.MemorySpace.SMEM),      # conv bias (1,)
        ],
        out_specs=pl.BlockSpec((Bt, C, HW), lambda g: (g, 0, 0)),
        compiler_params=pltpu.CompilerParams(
            dimension_semantics=("parallel",)),
    )(xf, w1.astype(jnp.float32), b1.reshape(Hd, 1).astype(jnp.float32),
      w2.astype(jnp.float32), b2.reshape(C, 1).astype(jnp.float32),
      M, cb.astype(jnp.float32))
    return out.reshape(B, C, H, W)


def reference(x, w1, b1, w2, b2, cw, cb):
    """Pure-JAX replica of the PyTorch forward (for validation)."""
    avg = x.mean(axis=(2, 3))
    mx = x.max(axis=(2, 3))
    feat = jnp.concatenate([avg, mx], axis=1)               # (B, 2C)
    h = jnp.maximum(feat @ w1.T + b1, 0.0)
    cwgt = jax.nn.sigmoid(h @ w2.T + b2)                    # (B, C)
    xw = x * cwgt[:, :, None, None]
    avg_sp = xw.mean(axis=1, keepdims=True)
    max_sp = xw.max(axis=1, keepdims=True)
    sp = jnp.concatenate([avg_sp, max_sp], axis=1)          # (B, 2, H, W)
    conv = lax.conv_general_dilated(
        sp, cw, window_strides=(1, 1), padding=((3, 3), (3, 3)),
        dimension_numbers=("NCHW", "OIHW", "NCHW"))
    swgt = jax.nn.sigmoid(conv + cb.reshape(1, 1, 1, 1))
    return xw * swgt


if __name__ == "__main__":
    B, C, H, W = 2, 16, 8, 8          # chess board: 8x8 spatial
    reduction_ratio = 8
    Hd = C // reduction_ratio

    key = jax.random.PRNGKey(0)
    ks = jax.random.split(key, 7)
    x = jax.random.normal(ks[0], (B, C, H, W), jnp.float32)
    # Deterministic synthetic parameters (torch Linear / Conv2d shapes).
    w1 = jax.random.normal(ks[1], (Hd, 2 * C), jnp.float32) * 0.2
    b1 = jax.random.normal(ks[2], (Hd,), jnp.float32) * 0.05
    w2 = jax.random.normal(ks[3], (C, Hd), jnp.float32) * 0.2
    b2 = jax.random.normal(ks[4], (C,), jnp.float32) * 0.05
    cw = jax.random.normal(ks[5], (1, 2, 7, 7), jnp.float32) * 0.1
    cb = jax.random.normal(ks[6], (1,), jnp.float32) * 0.05

    out = spatial_attention(x, w1, b1, w2, b2, cw, cb)
    out = jax.block_until_ready(out)

    ref = reference(x, w1, b1, w2, b2, cw, cb)
    assert out.shape == (B, C, H, W)
    err = float(jnp.max(jnp.abs(out - ref)))
    # Slightly loosened vs the roll-based version: the 7x7 conv now runs as a
    # default-precision MXU matmul inside the kernel.
    assert jnp.allclose(out, ref, atol=2e-3, rtol=2e-3), f"max abs err {err}"
    print("KERNEL_OK")
</pallas_src>

<mosaic_0001>
module attributes {stable_mosaic.version = 11 : i64} {
  func.func @_spatial_attention_kernel(%arg0: i32, %arg1: memref<1x16x64xf32, #tpu.memory_space<vmem>>, %arg2: memref<2x32xf32, #tpu.memory_space<vmem>>, %arg3: memref<2x1xf32, #tpu.memory_space<vmem>>, %arg4: memref<16x2xf32, #tpu.memory_space<vmem>>, %arg5: memref<16x1xf32, #tpu.memory_space<vmem>>, %arg6: memref<128x64xf32, #tpu.memory_space<vmem>>, %arg7: memref<1xf32, #tpu.memory_space<smem>>, %arg8: memref<1x16x64xf32, #tpu.memory_space<vmem>>) attributes {dimension_semantics = [#tpu.dimension_semantics<parallel>], iteration_bounds = array<i64: 2>, scalar_prefetch = 0 : i64, scratch_operands = 0 : i64, tpu.core_type = #tpu.core_type<tc>, window_params = [{transform_indices = @transform_0, window_bounds = array<i64: 1, 16, 64>}, {pipeline_mode = #tpu.pipeline_mode<synchronous>, transform_indices = @transform_1, window_bounds = array<i64: 2, 32>}, {pipeline_mode = #tpu.pipeline_mode<synchronous>, transform_indices = @transform_2, window_bounds = array<i64: 2, 1>}, {pipeline_mode = #tpu.pipeline_mode<synchronous>, transform_indices = @transform_3, window_bounds = array<i64: 16, 2>}, {pipeline_mode = #tpu.pipeline_mode<synchronous>, transform_indices = @transform_4, window_bounds = array<i64: 16, 1>}, {pipeline_mode = #tpu.pipeline_mode<synchronous>, transform_indices = @transform_5, window_bounds = array<i64: 128, 64>}, {transform_indices = @transform_6, window_bounds = array<i64: 1>}, {transform_indices = @transform_7, window_bounds = array<i64: 1, 16, 64>}]} {
    %c0 = arith.constant 0 : index
    %c0_0 = arith.constant 0 : index
    %c0_1 = arith.constant 0 : index
    %0 = vector.load %arg1[%c0, %c0_0, %c0_1] : memref<1x16x64xf32, #tpu.memory_space<vmem>>, vector<1x16x64xf32>
    %1 = vector.shape_cast %0 : vector<1x16x64xf32> to vector<16x64xf32>
    %cst = arith.constant dense<0.000000e+00> : vector<16xf32>
    %2 = vector.multi_reduction <add>, %1, %cst [1] : vector<16x64xf32> to vector<16xf32>
    %3 = vector.shape_cast %2 : vector<16xf32> to vector<16x1xf32>
    %cst_2 = arith.constant 6.400000e+01 : f32
    %4 = vector.broadcast %cst_2 : f32 to vector<16x1xf32>
    %5 = arith.divf %3, %4 : vector<16x1xf32>
    %cst_3 = arith.constant dense<0xFF800000> : vector<16xf32>
    %6 = vector.multi_reduction <maximumf>, %1, %cst_3 [1] : vector<16x64xf32> to vector<16xf32>
    %7 = vector.shape_cast %6 : vector<16xf32> to vector<16x1xf32>
    %8 = tpu.concatenate %5, %7 in 0 : vector<16x1xf32>, vector<16x1xf32> -> vector<32x1xf32>
    %c0_4 = arith.constant 0 : index
    %c0_5 = arith.constant 0 : index
    %9 = vector.load %arg2[%c0_4, %c0_5] : memref<2x32xf32, #tpu.memory_space<vmem>>, vector<2x32xf32>
    %cst_6 = arith.constant dense<0.000000e+00> : vector<2x1xf32>
    %10 = tpu.matmul %9, %8, %cst_6 {dimension_numbers = #tpu.dot_dimension_numbers<[1], [0], [0], [1], [0, 0, 1, 1], [], []>} : vector<2x32xf32>, vector<32x1xf32>, vector<2x1xf32> -> vector<2x1xf32>
    %c0_7 = arith.constant 0 : index
    %c0_8 = arith.constant 0 : index
    %11 = vector.load %arg3[%c0_7, %c0_8] : memref<2x1xf32, #tpu.memory_space<vmem>>, vector<2x1xf32>
    %12 = arith.addf %10, %11 : vector<2x1xf32>
    %cst_9 = arith.constant 0.000000e+00 : f32
    %13 = vector.broadcast %cst_9 : f32 to vector<2x1xf32>
    %14 = arith.maximumf %12, %13 : vector<2x1xf32>
    %c0_10 = arith.constant 0 : index
    %c0_11 = arith.constant 0 : index
    %15 = vector.load %arg4[%c0_10, %c0_11] : memref<16x2xf32, #tpu.memory_space<vmem>>, vector<16x2xf32>
    %cst_12 = arith.constant dense<0.000000e+00> : vector<16x1xf32>
    %16 = tpu.matmul %15, %14, %cst_12 {dimension_numbers = #tpu.dot_dimension_numbers<[1], [0], [0], [1], [0, 0, 1, 1], [], []>} : vector<16x2xf32>, vector<2x1xf32>, vector<16x1xf32> -> vector<16x1xf32>
    %c0_13 = arith.constant 0 : index
    %c0_14 = arith.constant 0 : index
    %17 = vector.load %arg5[%c0_13, %c0_14] : memref<16x1xf32, #tpu.memory_space<vmem>>, vector<16x1xf32>
    %18 = arith.addf %16, %17 : vector<16x1xf32>
    %cst_15 = arith.constant 5.000000e-01 : f32
    %19 = vector.broadcast %cst_15 : f32 to vector<16x1xf32>
    %20 = arith.mulf %19, %18 : vector<16x1xf32>
    %21 = math.tanh %20 : vector<16x1xf32>
    %cst_16 = arith.constant 5.000000e-01 : f32
    %22 = vector.broadcast %cst_16 : f32 to vector<16x1xf32>
    %23 = arith.mulf %22, %21 : vector<16x1xf32>
    %cst_17 = arith.constant 5.000000e-01 : f32
    %24 = vector.broadcast %cst_17 : f32 to vector<16x1xf32>
    %25 = arith.addf %23, %24 : vector<16x1xf32>
    %c0_18 = arith.constant 0 : index
    %c0_19 = arith.constant 0 : index
    %c0_20 = arith.constant 0 : index
    %26 = vector.load %arg1[%c0_18, %c0_19, %c0_20] : memref<1x16x64xf32, #tpu.memory_space<vmem>>, vector<1x16x64xf32>
    %27 = vector.shape_cast %26 : vector<1x16x64xf32> to vector<16x64xf32>
    %28 = vector.broadcast %25 : vector<16x1xf32> to vector<16x64xf32>
    %29 = arith.mulf %27, %28 : vector<16x64xf32>
    %cst_21 = arith.constant dense<0.000000e+00> : vector<64xf32>
    %30 = vector.multi_reduction <add>, %29, %cst_21 [0] : vector<16x64xf32> to vector<64xf32>
    %31 = vector.shape_cast %30 : vector<64xf32> to vector<1x64xf32>
    %cst_22 = arith.constant 1.600000e+01 : f32
    %32 = vector.broadcast %cst_22 : f32 to vector<1x64xf32>
    %33 = arith.divf %31, %32 : vector<1x64xf32>
    %cst_23 = arith.constant dense<0xFF800000> : vector<64xf32>
    %34 = vector.multi_reduction <maximumf>, %29, %cst_23 [0] : vector<16x64xf32> to vector<64xf32>
    %35 = vector.shape_cast %34 : vector<64xf32> to vector<1x64xf32>
    %36 = tpu.concatenate %33, %35 in 1 : vector<1x64xf32>, vector<1x64xf32> -> vector<1x128xf32>
    %c0_24 = arith.constant 0 : index
    %c0_25 = arith.constant 0 : index
    %37 = vector.load %arg6[%c0_24, %c0_25] : memref<128x64xf32, #tpu.memory_space<vmem>>, vector<128x64xf32>
    %cst_26 = arith.constant dense<0.000000e+00> : vector<1x64xf32>
    %38 = tpu.matmul %36, %37, %cst_26 {dimension_numbers = #tpu.dot_dimension_numbers<[1], [0], [0], [1], [0, 0, 1, 1], [], []>} : vector<1x128xf32>, vector<128x64xf32>, vector<1x64xf32> -> vector<1x64xf32>
    %c0_27 = arith.constant 0 : index
    %39 = memref.load %arg7[%c0_27] : memref<1xf32, #tpu.memory_space<smem>>
    %40 = vector.broadcast %39 : f32 to vector<1x64xf32>
    %41 = arith.addf %38, %40 : vector<1x64xf32>
    %cst_28 = arith.constant 5.000000e-01 : f32
    %42 = vector.broadcast %cst_28 : f32 to vector<1x64xf32>
    %43 = arith.mulf %42, %41 : vector<1x64xf32>
    %44 = math.tanh %43 : vector<1x64xf32>
    %cst_29 = arith.constant 5.000000e-01 : f32
    %45 = vector.broadcast %cst_29 : f32 to vector<1x64xf32>
    %46 = arith.mulf %45, %44 : vector<1x64xf32>
    %cst_30 = arith.constant 5.000000e-01 : f32
    %47 = vector.broadcast %cst_30 : f32 to vector<1x64xf32>
    %48 = arith.addf %46, %47 : vector<1x64xf32>
    %49 = vector.broadcast %48 : vector<1x64xf32> to vector<16x64xf32>
    %50 = arith.mulf %29, %49 : vector<16x64xf32>
    %c0_31 = arith.constant 0 : index
    %c0_32 = arith.constant 0 : index
    %c0_33 = arith.constant 0 : index
    %51 = vector.load %arg8[%c0_31, %c0_32, %c0_33] : memref<1x16x64xf32, #tpu.memory_space<vmem>>, vector<1x16x64xf32>
    %52 = vector.shape_cast %51 : vector<1x16x64xf32> to vector<16x64xf32>
    %53 = vector.shape_cast %50 : vector<16x64xf32> to vector<1x16x64xf32>
    tpu.vector_store %arg8[%c0_31, %c0_32, %c0_33], %53 {strides = array<i32>} : memref<1x16x64xf32, #tpu.memory_space<vmem>>, vector<1x16x64xf32>,
    return
  }
  func.func @transform_0(%arg0: i32) -> (i32, i32, i32) {
    %c0_i32 = arith.constant 0 : i32
    %c0_i32_0 = arith.constant 0 : i32
    %c0_i32_1 = arith.constant 0 : i32
    return %arg0, %c0_i32, %c0_i32_0 : i32, i32, i32
  }
  func.func @transform_1(%arg0: i32) -> (i32, i32) {
    %c0_i32 = arith.constant 0 : i32
    %c0_i32_0 = arith.constant 0 : i32
    %c0_i32_1 = arith.constant 0 : i32
    return %c0_i32, %c0_i32_0 : i32, i32
  }
  func.func @transform_2(%arg0: i32) -> (i32, i32) {
    %c0_i32 = arith.constant 0 : i32
    %c0_i32_0 = arith.constant 0 : i32
    %c0_i32_1 = arith.constant 0 : i32
    return %c0_i32, %c0_i32_0 : i32, i32
  }
  func.func @transform_3(%arg0: i32) -> (i32, i32) {
    %c0_i32 = arith.constant 0 : i32
    %c0_i32_0 = arith.constant 0 : i32
    %c0_i32_1 = arith.constant 0 : i32
    return %c0_i32, %c0_i32_0 : i32, i32
  }
  func.func @transform_4(%arg0: i32) -> (i32, i32) {
    %c0_i32 = arith.constant 0 : i32
    %c0_i32_0 = arith.constant 0 : i32
    %c0_i32_1 = arith.constant 0 : i32
    return %c0_i32, %c0_i32_0 : i32, i32
  }
  func.func @transform_5(%arg0: i32) -> (i32, i32) {
    %c0_i32 = arith.constant 0 : i32
    %c0_i32_0 = arith.constant 0 : i32
    %c0_i32_1 = arith.constant 0 : i32
    return %c0_i32, %c0_i32_0 : i32, i32
  }
  func.func @transform_6(%arg0: i32) -> i32 {
    %c0_i32 = arith.constant 0 : i32
    %c0_i32_0 = arith.constant 0 : i32
    return %c0_i32 : i32
  }
  func.func @transform_7(%arg0: i32) -> (i32, i32, i32) {
    %c0_i32 = arith.constant 0 : i32
    %c0_i32_0 = arith.constant 0 : i32
    %c0_i32_1 = arith.constant 0 : i32
    return %arg0, %c0_i32, %c0_i32_0 : i32, i32, i32
  }
}

</mosaic_0001>

<llo_original>
// kernel: tpu_custom_call.1
$region0: #{tpu_custom_call.1}
  #allocation0 [shape = 'u32[]', space=smem, size = 0x4, offset = 0x4, fixed_abs, tag = 'smem constant byte address 0x4 - core index']
  #allocation1 [shape = 'u32[144,128]{1,0:T(1,128)}', space=vmem, size = 0x12000, scoped, tag = 'internal scratch']
  #allocation2 [shape = 'f32[1]{0:T(128)S(6)}', space=smem, size = 0x200, scoped, tag = 'scoped memory for tpu_custom_call.1']
  %s0 = inlined_call_operand.vmem [shape: f32[2,16,64], index: 0, kind: input, shape index: {}]
  %s1 = inlined_call_operand.vmem [shape: f32[2,32], index: 1, kind: input, shape index: {}]
  %s2 = inlined_call_operand.vmem [shape: f32[2,1], index: 2, kind: input, shape index: {}]
  %s3 = inlined_call_operand.vmem [shape: f32[16,2], index: 3, kind: input, shape index: {}]
  %s4 = inlined_call_operand.vmem [shape: f32[16,1], index: 4, kind: input, shape index: {}]
  %s5 = inlined_call_operand.vmem [shape: f32[128,64], index: 5, kind: input, shape index: {}]
  %s6 = inlined_call_operand.<no memory space> [shape: f32[1], index: 6, kind: input, shape index: {}]
  %s7 = inlined_call_operand.hbm [shape: f32[2,16,64], index: 7, kind: output, shape index: {}]
  %s8 = sld [smem:[#allocation0]]
  $region61: #{tpu_custom_call.1} parent=0
    _
  %s10 = ssub.s32 1, %s8
  %s11 = scalar_select 0, %s10, %s8
  %12 = sst [smem:[#allocation2]] %s6
  $region1: #{tpu_custom_call.1} parent=0
    #allocation3 [shape = 'u8[16384]{0}', space=vmem, size = 0x4000, scoped, tag = 'output window, operand 0']
    #allocation4 [shape = 's32[2]{0}', space=sflag, size = 0x8, scoped, tag = 'scoped memory for tpu_custom_call.1']
    %13 = vsyncpa [#allocation4], 0
    %s14 = scalar_lea.sflag [#allocation4], 1
    %15 = vsyncpa %s14, 0
    loop: start=0, step=1, limit=4
    $region2: #{tpu_custom_call.1} parent=1 // loop_pre_header
      _
    $region3: #{tpu_custom_call.1} parent=1 // loop_header
      %s17 = sphi 0, %s21
      %p18 = scmp.ge.s32.totalorder %s17, 4
      %s27 = sphi 0, %s29
      %s30 = sphi 0, %s27
      %s31 = sphi 0, %s30
      %s47 = sphi 0, %s31
      %s51 = sphi 0, %s51
      %s53 = sphi 0, %s51
      %s54 = sphi 0, %s53
      %s68 = sphi 0, %s54
      %s72 = sphi 0, %s72
      %s74 = sphi 0, %s72
      %s75 = sphi 0, %s74
      %s89 = sphi 0, %s75
      %s93 = sphi 0, %s93
      %s95 = sphi 0, %s93
      %s96 = sphi 0, %s95
      %s110 = sphi 0, %s96
      %s114 = sphi 0, %s114
      %s116 = sphi 0, %s114
      %s117 = sphi 0, %s116
      %s131 = sphi 0, %s117
      %s135 = sphi 0, %s135
      %s137 = sphi 0, %s135
      %s138 = sphi 0, %s137
      %s152 = sphi 0, %s138
      %s156 = sphi 0, %s156
      %s158 = sphi 0, %s156
      %s159 = sphi 0, %s158
      %s173 = sphi 0, %s159
      %s179 = sphi 0, %s181
      %s182 = sphi 0, %s179
      %s183 = sphi 0, %s182
      %s199 = sphi 0, %s183
    $region4: #{tpu_custom_call.1} parent=1 // loop_header_branch
      %20 = sbr.rel (%p18) target = $region8
    $region5: #{tpu_custom_call.1} parent=1 // loop_body
      %s22 = ssub.s32 %s17, 1
      %s23 = ssub.s32 %s17, 2
      %s24 = sadd.s32 %s17, 1
      %s25 = ssub.s32 %s17, %s24
      %p26 = scmp.eq.s32.totalorder %s25, 0
      %s28 = sadd.s32 %s27, 1
      %s29 = scalar_select %p26, %s27, %s28
      %p32 = pneg %p26
      %p33 = scmp.eq.s32.totalorder %s17, 1
      %p34 = por %p32, %p33
      %p35 = scmp.ne.s32.totalorder %s27, %s30
      %p36 = scmp.eq.s32.totalorder %s17, 0
      %p37 = por %p35, %p36
      %p38 = scmp.ne.s32.totalorder %s27, %s30
      %p39 = scmp.eq.s32.totalorder %s22, 1
      %p40 = por %p38, %p39
      %p41 = scmp.ne.s32.totalorder %s30, %s31
      %p42 = scmp.eq.s32.totalorder %s22, 0
      %p43 = por %p41, %p42
      %p44 = scmp.ne.s32.totalorder %s30, %s31
      %p45 = scmp.eq.s32.totalorder %s23, 1
      %p46 = por %p44, %p45
      %p48 = scmp.ne.s32.totalorder %s31, %s47
      %p49 = scmp.eq.s32.totalorder %s23, 0
      %p50 = por %p48, %p49
      %s52 = sadd.s32 %s51, 1
      %p55 = scmp.eq.s32.totalorder %s17, 1
      %p56 = scmp.ne.s32.totalorder %s51, %s53
      %p57 = scmp.eq.s32.totalorder %s17, 0
      %p58 = por %p56, %p57
      %p59 = scmp.ne.s32.totalorder %s51, %s53
      %p60 = scmp.eq.s32.totalorder %s22, 1
      %p61 = por %p59, %p60
      %p62 = scmp.ne.s32.totalorder %s53, %s54
      %p63 = scmp.eq.s32.totalorder %s22, 0
      %p64 = por %p62, %p63
      %p65 = scmp.ne.s32.totalorder %s53, %s54
      %p66 = scmp.eq.s32.totalorder %s23, 1
      %p67 = por %p65, %p66
      %p69 = scmp.ne.s32.totalorder %s54, %s68
      %p70 = scmp.eq.s32.totalorder %s23, 0
      %p71 = por %p69, %p70
      %s73 = sadd.s32 %s72, 1
      %p76 = scmp.eq.s32.totalorder %s17, 1
      %p77 = scmp.ne.s32.totalorder %s72, %s74
      %p78 = scmp.eq.s32.totalorder %s17, 0
      %p79 = por %p77, %p78
      %p80 = scmp.ne.s32.totalorder %s72, %s74
      %p81 = scmp.eq.s32.totalorder %s22, 1
      %p82 = por %p80, %p81
      %p83 = scmp.ne.s32.totalorder %s74, %s75
      %p84 = scmp.eq.s32.totalorder %s22, 0
      %p85 = por %p83, %p84
      %p86 = scmp.ne.s32.totalorder %s74, %s75
      %p87 = scmp.eq.s32.totalorder %s23, 1
      %p88 = por %p86, %p87
      %p90 = scmp.ne.s32.totalorder %s75, %s89
      %p91 = scmp.eq.s32.totalorder %s23, 0
      %p92 = por %p90, %p91
      %s94 = sadd.s32 %s93, 1
      %p97 = scmp.eq.s32.totalorder %s17, 1
      %p98 = scmp.ne.s32.totalorder %s93, %s95
      %p99 = scmp.eq.s32.totalorder %s17, 0
      %p100 = por %p98, %p99
      %p101 = scmp.ne.s32.totalorder %s93, %s95
      %p102 = scmp.eq.s32.totalorder %s22, 1
      %p103 = por %p101, %p102
      %p104 = scmp.ne.s32.totalorder %s95, %s96
      %p105 = scmp.eq.s32.totalorder %s22, 0
      %p106 = por %p104, %p105
      %p107 = scmp.ne.s32.totalorder %s95, %s96
      %p108 = scmp.eq.s32.totalorder %s23, 1
      %p109 = por %p107, %p108
      %p111 = scmp.ne.s32.totalorder %s96, %s110
      %p112 = scmp.eq.s32.totalorder %s23, 0
      %p113 = por %p111, %p112
      %s115 = sadd.s32 %s114, 1
      %p118 = scmp.eq.s32.totalorder %s17, 1
      %p119 = scmp.ne.s32.totalorder %s114, %s116
      %p120 = scmp.eq.s32.totalorder %s17, 0
      %p121 = por %p119, %p120
      %p122 = scmp.ne.s32.totalorder %s114, %s116
      %p123 = scmp.eq.s32.totalorder %s22, 1
      %p124 = por %p122, %p123
      %p125 = scmp.ne.s32.totalorder %s116, %s117
      %p126 = scmp.eq.s32.totalorder %s22, 0
      %p127 = por %p125, %p126
      %p128 = scmp.ne.s32.totalorder %s116, %s117
      %p129 = scmp.eq.s32.totalorder %s23, 1
      %p130 = por %p128, %p129
      %p132 = scmp.ne.s32.totalorder %s117, %s131
      %p133 = scmp.eq.s32.totalorder %s23, 0
      %p134 = por %p132, %p133
      %s136 = sadd.s32 %s135, 1
      %p139 = scmp.eq.s32.totalorder %s17, 1
      %p140 = scmp.ne.s32.totalorder %s135, %s137
      %p141 = scmp.eq.s32.totalorder %s17, 0
      %p142 = por %p140, %p141
      %p143 = scmp.ne.s32.totalorder %s135, %s137
      %p144 = scmp.eq.s32.totalorder %s22, 1
      %p145 = por %p143, %p144
      %p146 = scmp.ne.s32.totalorder %s137, %s138
      %p147 = scmp.eq.s32.totalorder %s22, 0
      %p148 = por %p146, %p147
      %p149 = scmp.ne.s32.totalorder %s137, %s138
      %p150 = scmp.eq.s32.totalorder %s23, 1
      %p151 = por %p149, %p150
      %p153 = scmp.ne.s32.totalorder %s138, %s152
      %p154 = scmp.eq.s32.totalorder %s23, 0
      %p155 = por %p153, %p154
      %s157 = sadd.s32 %s156, 1
      %p160 = scmp.eq.s32.totalorder %s17, 1
      %p161 = scmp.ne.s32.totalorder %s156, %s158
      %p162 = scmp.eq.s32.totalorder %s17, 0
      %p163 = por %p161, %p162
      %p164 = scmp.ne.s32.totalorder %s156, %s158
      %p165 = scmp.eq.s32.totalorder %s22, 1
      %p166 = por %p164, %p165
      %p167 = scmp.ne.s32.totalorder %s158, %s159
      %p168 = scmp.eq.s32.totalorder %s22, 0
      %p169 = por %p167, %p168
      %p170 = scmp.ne.s32.totalorder %s158, %s159
      %p171 = scmp.eq.s32.totalorder %s23, 1
      %p172 = por %p170, %p171
      %p174 = scmp.ne.s32.totalorder %s159, %s173
      %p175 = scmp.eq.s32.totalorder %s23, 0
      %p176 = por %p174, %p175
      %s177 = ssub.s32 %s17, %s24
      %p178 = scmp.eq.s32.totalorder %s177, 0
      %s180 = sadd.s32 %s179, 1
      %s181 = scalar_select %p178, %s179, %s180
      %p184 = pneg %p178
      %p185 = scmp.eq.s32.totalorder %s17, 1
      %p186 = por %p184, %p185
      %p187 = scmp.ne.s32.totalorder %s179, %s182
      %p188 = scmp.eq.s32.totalorder %s17, 0
      %p189 = por %p187, %p188
      %p190 = scmp.ne.s32.totalorder %s179, %s182
      %p191 = scmp.eq.s32.totalorder %s22, 1
      %p192 = por %p190, %p191
      %p193 = scmp.ne.s32.totalorder %s182, %s183
      %p194 = scmp.eq.s32.totalorder %s22, 0
      %p195 = por %p193, %p194
      %p196 = scmp.ne.s32.totalorder %s182, %s183
      %p197 = scmp.eq.s32.totalorder %s23, 1
      %p198 = por %p196, %p197
      %p200 = scmp.ne.s32.totalorder %s183, %s199
      %p201 = scmp.eq.s32.totalorder %s23, 0
      %p202 = por %p200, %p201
      %p203 = scmp.le.s32.totalorder 1, %s17
      %p204 = scmp.lt.s32.totalorder %s17, 3
      %p205 = pnand %p203, %p204
      %p206 = pneg %p205
      // Predicated region
      $region9: #{tpu_custom_call.1} parent=5 // pred_check
        _
      $region10: #{tpu_custom_call.1} parent=5 // pred_check_branch
        %208 = sbr.rel (%p205) target = $region12
      $region11: #{tpu_custom_call.1} parent=5 // pred_region
        %s209 = ssub.s32 %s17, 1
        // Predicated region
        $region13: #{tpu_custom_call.1} parent=11 // pred_check
          %p210 = pneg %p64
        $region14: #{tpu_custom_call.1} parent=11 // pred_check_branch
          %212 = sbr.rel (%p210) target = $region16
        $region15: #{tpu_custom_call.1} parent=11 // pred_region
          _
        $region16: #{tpu_custom_call.1} parent=11 // pred_fallthru
          _
        // Predicated region
        $region17: #{tpu_custom_call.1} parent=11 // pred_check
          %p213 = pneg %p85
        $region18: #{tpu_custom_call.1} parent=11 // pred_check_branch
          %215 = sbr.rel (%p213) target = $region20
        $region19: #{tpu_custom_call.1} parent=11 // pred_region
          _
        $region20: #{tpu_custom_call.1} parent=11 // pred_fallthru
          _
        // Predicated region
        $region21: #{tpu_custom_call.1} parent=11 // pred_check
          %p216 = pneg %p106
        $region22: #{tpu_custom_call.1} parent=11 // pred_check_branch
          %218 = sbr.rel (%p216) target = $region24
        $region23: #{tpu_custom_call.1} parent=11 // pred_region
          _
        $region24: #{tpu_custom_call.1} parent=11 // pred_fallthru
          _
        // Predicated region
        $region25: #{tpu_custom_call.1} parent=11 // pred_check
          %p219 = pneg %p127
        $region26: #{tpu_custom_call.1} parent=11 // pred_check_branch
          %221 = sbr.rel (%p219) target = $region28
        $region27: #{tpu_custom_call.1} parent=11 // pred_region
          _
        $region28: #{tpu_custom_call.1} parent=11 // pred_fallthru
          _
        // Predicated region
        $region29: #{tpu_custom_call.1} parent=11 // pred_check
          %p222 = pneg %p148
        $region30: #{tpu_custom_call.1} parent=11 // pred_check_branch
          %224 = sbr.rel (%p222) target = $region32
        $region31: #{tpu_custom_call.1} parent=11 // pred_region
          _
        $region32: #{tpu_custom_call.1} parent=11 // pred_fallthru
          _
        // Predicated region
        $region33: #{tpu_custom_call.1} parent=11 // pred_check
          %p225 = pneg %p169
        $region34: #{tpu_custom_call.1} parent=11 // pred_check_branch
          %227 = sbr.rel (%p225) target = $region36
        $region35: #{tpu_custom_call.1} parent=11 // pred_region
          _
        $region36: #{tpu_custom_call.1} parent=11 // pred_fallthru
          _
      $region12: #{tpu_custom_call.1} parent=5 // pred_fallthru
        _
      %p228 = scmp.lt.s32.totalorder %s17, 2
      // Predicated region
      $region37: #{tpu_custom_call.1} parent=5 // pred_check
        %p229 = pneg %p228
      $region38: #{tpu_custom_call.1} parent=5 // pred_check_branch
        %231 = sbr.rel (%p229) target = $region40
      $region39: #{tpu_custom_call.1} parent=5 // pred_region
        // Predicated region
        $region41: #{tpu_custom_call.1} parent=39 // pred_check
          %p232 = pneg %p37
        $region42: #{tpu_custom_call.1} parent=39 // pred_check_branch
          %234 = sbr.rel (%p232) target = $region44
        $region43: #{tpu_custom_call.1} parent=39 // pred_region
          %p235 = scmp.lt.s32.totalorder %s17, 1
          %s236 = scalar_select %p235, %s17, 1
          %s237 = smul.addr %s236, 2
          %s238 = smul.addr %s237, 8
          %s239 = scalar_lea.vmem %s0, %s238
        $region44: #{tpu_custom_call.1} parent=39 // pred_fallthru
          _
      $region40: #{tpu_custom_call.1} parent=5 // pred_fallthru
        _
      %p240 = scmp.le.s32.totalorder 1, %s17
      %p241 = scmp.lt.s32.totalorder %s17, 3
      %p242 = pnand %p240, %p241
      %p243 = pneg %p242
      // Predicated region
      $region45: #{tpu_custom_call.1} parent=5 // pred_check
        _
      $region46: #{tpu_custom_call.1} parent=5 // pred_check_branch
        %245 = sbr.rel (%p242) target = $region48
      $region47: #{tpu_custom_call.1} parent=5 // pred_region
        %s246 = ssub.s32 %s17, 1
        %p247 = scmp.lt.s32.totalorder %s22, 1
        %s248 = scalar_select %p247, %s22, 1
        %s249 = smul.addr %s248, 2
        %s250 = smul.addr %s249, 8
        %s251 = scalar_lea.vmem %s0, %s250
        %p252 = pneg %p43
        %p253 = pneg %p40
        %p254 = pneg %p64
        %p255 = pneg %p61
        %p256 = pneg %p85
        %p257 = pneg %p82
        %p258 = pneg %p106
        %p259 = pneg %p103
        %p260 = pneg %p127
        %p261 = pneg %p124
        %p262 = pneg %p148
        %p263 = pneg %p145
        %p264 = pneg %p169
        %p265 = pneg %p166
        %p266 = pneg %p195
        %p267 = pneg %p192
        %s268 = sand.u32 %s182, 1
        %s269 = scalar_lea.sflag [#allocation4], %s268
        %s270 = sand.u32 %s182, 1
        %s271 = smul.addr %s270, 16
        %s272 = scalar_lea.vmem [#allocation3], %s271
        %p273 = scmp.lt.s32.totalorder %s22, 1
        %s274 = scalar_select %p273, %s22, 1
        %s275 = smul.addr %s274, 2
        %s276 = smul.addr %s275, 8
        %s277 = scalar_lea.vmem %s0, %s276
        %v278 = vld [vmem:[%s277] sm:$0xff]
        %v279 = vld [vmem:[%s277 + $0x8] sm:$0xff]
        %vm280 = vcmask 523264
        %v281 = vsel %vm280, %v278, 0.0
        %282 = vadd.xlane.f32.xlu0 %v281
        %v283 = vpop.xlane.xlu0 %282
        %v284 = vsel %vm280, %v279, 0.0
        %285 = vadd.xlane.f32.xlu0 %v284
        %v286 = vpop.xlane.xlu0 %285
        %v287 = vrcp.pop 64.0
        %v288 = vmul.f32 %v283, %v287
        %v289 = vmul.f32 %v286, %v287
        %v290 = vsel %vm280, %v278, -inf
        %291 = vmax.xlane.f32.xlu0 %v290
        %v292 = vpop.xlane.xlu0 %291
        %v293 = vsel %vm280, %v279, -inf
        %294 = vmax.xlane.f32.xlu0 %v293
        %v295 = vpop.xlane.xlu0 %294
        %v296 = vld [vmem:[%s1] sm:$0x3]
        %v297 = vld [vmem:[%s2] sm:$0x3]
        %vm298 = vcmask 261120
        %v300 = vsel %vm298, %v296, 0
        %302 = vmatprep.subr.mxu0 0.0
        %303 = vmatpush1.msra.mxu0 %v288
        %304 = vmatprep.subr.mxu0 0.0
        %305 = vmatpush1.msra.mxu0 %v289
        %306 = vmatprep.subr.mxu0 0.0
        %307 = vmatpush1.msra.mxu0 %v292
        %308 = vmatprep.subr.mxu0 0.0
        %309 = vmatpush1.msra.mxu0 %v295
        %310 = vmatprep.subr.mxu0 0.0
        %311 = vmatpush1.msra.mxu0 0.0
        %312 = vmatprep.subr.mxu0 0.0
        %313 = vmatpush1.msra.mxu0 0.0
        %314 = vmatprep.subr.mxu0 0.0
        %315 = vmatpush1.msra.mxu0 0.0
        %316 = vmatprep.subr.mxu0 0.0
        %317 = vmatpush1.msra.mxu0 0.0
        %318 = vmatprep.subr.mxu0 0.0
        %319 = vmatpush1.msra.mxu0 0.0
        %320 = vmatprep.subr.mxu0 0.0
        %321 = vmatpush1.msra.mxu0 0.0
        %322 = vmatprep.subr.mxu0 0.0
        %323 = vmatpush1.msra.mxu0 0.0
        %324 = vmatprep.subr.mxu0 0.0
        %325 = vmatpush1.msra.mxu0 0.0
        %326 = vmatprep.subr.mxu0 0.0
        %327 = vmatpush1.msra.mxu0 0.0
        %328 = vmatprep.subr.mxu0 0.0
        %329 = vmatpush1.msra.mxu0 0.0
        %330 = vmatprep.subr.mxu0 0.0
        %331 = vmatpush1.msra.mxu0 0.0
        %332 = vmatprep.subr.mxu0 0.0
        %333 = vmatpush1.msra.mxu0 0.0
        %334 = vmatprep.subr.mxu0 0.0
        %335 = vmatpush1.msra.mxu0 0.0
        %336 = vmatprep.subr.mxu0 0.0
        %337 = vmatpush1.msra.mxu0 0.0
        %338 = vmatprep.subr.mxu0 0.0
        %339 = vmatpush1.msra.mxu0 0.0
        %340 = vmatprep.subr.mxu0 0.0
        %341 = vmatpush1.msra.mxu0 0.0
        %342 = vmatprep.subr.mxu0 0.0
        %343 = vmatpush1.msra.mxu0 0.0
        %344 = vmatprep.subr.mxu0 0.0
        %345 = vmatpush1.msra.mxu0 0.0
        %346 = vmatprep.subr.mxu0 0.0
        %347 = vmatpush1.msra.mxu0 0.0
        %348 = vmatprep.subr.mxu0 0.0
        %349 = vmatpush1.msra.mxu0 0.0
        %350 = vmatprep.subr.mxu0 0.0
        %351 = vmatpush1.msra.mxu0 0.0
        %352 = vmatprep.subr.mxu0 0.0
        %353 = vmatpush1.msra.mxu0 0.0
        %354 = vmatprep.subr.mxu0 0.0
        %355 = vmatpush1.msra.mxu0 0.0
        %356 = vmatprep.subr.mxu0 0.0
        %357 = vmatpush1.msra.mxu0 0.0
        %358 = vmatprep.subr.mxu0 0.0
        %359 = vmatpush1.msra.mxu0 0.0
        %360 = vmatprep.subr.mxu0 0.0
        %361 = vmatpush1.msra.mxu0 0.0
        %362 = vmatprep.subr.mxu0 0.0
        %363 = vmatpush1.msra.mxu0 0.0
        %364 = vmatprep.subr.mxu0 0.0
        %365 = vmatpush1.msra.mxu0 0.0
        %366 = vmatprep.mubr.f32.mxu0 0.0
        %367 = vmatmul.mubr.f32.gmra.mrb[0].mxu0 %v300
        %v368 = vpop.f32.mrb[0].mxu0
        %v369 = vadd.f32 %v297, %v368
        %v370 = vpop.f32.mrb[0].mxu0
        %371 = vdwg.mxu0
        %v372 = vmax.f32 %v369, 0.0
        %v373 = vld [vmem:[%s3] sm:$0xff]
        %v374 = vld [vmem:[%s3 + $0x8] sm:$0xff]
        %v375 = vld [vmem:[%s4] sm:$0xff]
        %v376 = vld [vmem:[%s4 + $0x8] sm:$0xff]
        %vm377 = vcmask 15360
        %v379 = vsel %vm377, %v373, 0
        %v382 = vsel %vm377, %v374, 0
        %vm384 = vcmask 1041408
        %v386 = vsel %vm384, %v372, 0
        %388 = vmatprep.subr.mxu0 0.0
        %389 = vmatpush1.msra.mxu0 %v386
        %390 = vmatprep.subr.mxu0 0.0
        %391 = vmatpush1.msra.mxu0 0.0
        %392 = vmatprep.subr.mxu0 0.0
        %393 = vmatpush1.msra.mxu0 0.0
        %394 = vmatprep.subr.mxu0 0.0
        %395 = vmatpush1.msra.mxu0 0.0
        %396 = vmatprep.subr.mxu0 0.0
        %397 = vmatpush1.msra.mxu0 0.0
        %398 = vmatprep.subr.mxu0 0.0
        %399 = vmatpush1.msra.mxu0 0.0
        %400 = vmatprep.subr.mxu0 0.0
        %401 = vmatpush1.msra.mxu0 0.0
        %402 = vmatprep.subr.mxu0 0.0
        %403 = vmatpush1.msra.mxu0 0.0
        %404 = vmatprep.subr.mxu0 0.0
        %405 = vmatpush1.msra.mxu0 0.0
        %406 = vmatprep.subr.mxu0 0.0
        %407 = vmatpush1.msra.mxu0 0.0
        %408 = vmatprep.subr.mxu0 0.0
        %409 = vmatpush1.msra.mxu0 0.0
        %410 = vmatprep.subr.mxu0 0.0
        %411 = vmatpush1.msra.mxu0 0.0
        %412 = vmatprep.subr.mxu0 0.0
        %413 = vmatpush1.msra.mxu0 0.0
        %414 = vmatprep.subr.mxu0 0.0
        %415 = vmatpush1.msra.mxu0 0.0
        %416 = vmatprep.subr.mxu0 0.0
        %417 = vmatpush1.msra.mxu0 0.0
        %418 = vmatprep.subr.mxu0 0.0
        %419 = vmatpush1.msra.mxu0 0.0
        %420 = vmatprep.subr.mxu0 0.0
        %421 = vmatpush1.msra.mxu0 0.0
        %422 = vmatprep.subr.mxu0 0.0
        %423 = vmatpush1.msra.mxu0 0.0
        %424 = vmatprep.subr.mxu0 0.0
        %425 = vmatpush1.msra.mxu0 0.0
        %426 = vmatprep.subr.mxu0 0.0
        %427 = vmatpush1.msra.mxu0 0.0
        %428 = vmatprep.subr.mxu0 0.0
        %429 = vmatpush1.msra.mxu0 0.0
        %430 = vmatprep.subr.mxu0 0.0
        %431 = vmatpush1.msra.mxu0 0.0
        %432 = vmatprep.subr.mxu0 0.0
        %433 = vmatpush1.msra.mxu0 0.0
        %434 = vmatprep.subr.mxu0 0.0
        %435 = vmatpush1.msra.mxu0 0.0
        %436 = vmatprep.subr.mxu0 0.0
        %437 = vmatpush1.msra.mxu0 0.0
        %438 = vmatprep.subr.mxu0 0.0
        %439 = vmatpush1.msra.mxu0 0.0
        %440 = vmatprep.subr.mxu0 0.0
        %441 = vmatpush1.msra.mxu0 0.0
        %442 = vmatprep.subr.mxu0 0.0
        %443 = vmatpush1.msra.mxu0 0.0
        %444 = vmatprep.subr.mxu0 0.0
        %445 = vmatpush1.msra.mxu0 0.0
        %446 = vmatprep.subr.mxu0 0.0
        %447 = vmatpush1.msra.mxu0 0.0
        %448 = vmatprep.subr.mxu0 0.0
        %449 = vmatpush1.msra.mxu0 0.0
        %450 = vmatprep.subr.mxu0 0.0
        %451 = vmatpush1.msra.mxu0 0.0
        %452 = vmatprep.mubr.f32.mxu0 0.0
        %453 = vmatmul.mubr.f32.gmra.mrb[0].mxu0 %v379
        %v454 = vpop.f32.mrb[0].mxu0
        %v455 = vadd.f32 %v375, %v454
        %v456 = vpop.f32.mrb[0].mxu0
        %457 = vmatprep.mubr.f32.mxu0 0.0
        %458 = vmatmul.mubr.f32.gmra.mrb[0].mxu0 %v382
        %v459 = vpop.f32.mrb[0].mxu0
        %v460 = vadd.f32 %v376, %v459
        %v461 = vpop.f32.mrb[0].mxu0
        %462 = vdwg.mxu0
        %v463 = vmul.f32 %v455, 0.5
        %v464 = vmul.f32 %v460, 0.5
        %v465 = vtanh.pop %v463
        %v466 = vtanh.pop %v464
        %v467 = vmul.f32 %v465, 0.5
        %v468 = vmul.f32 %v466, 0.5
        %v469 = vadd.f32 %v467, 0.5
        %v470 = vadd.f32 %v468, 0.5
        %472 = vset.pattern.permute.xlu0 0
        %473 = vperm.xlu0 %472, %v469
        %v474 = vpop.permute.xlu0 %473
        %477 = vset.pattern.permute.xlu0 0
        %478 = vperm.xlu0 %477, %v470
        %v479 = vpop.permute.xlu0 %478
        %v481 = vmul.f32 %v278, %v474
        %v482 = vmul.f32 %v279, %v479
        %v483 = vsel %vm280, %v481, 0.0
        %v484 = vsel %vm280, %v482, 0.0
        %v485 = vadd.f32 %v483, %v484
        %v486 = vrot.slane %v485, 4
        %v487 = vadd.f32 %v485, %v486
        %v488 = vrot.slane %v487, 2
        %v489 = vadd.f32 %v487, %v488
        %v490 = vrot.slane %v489, 1
        %v491 = vadd.f32 %v489, %v490
        %v492 = vrcp.pop 16.0
        %v493 = vmul.f32 %v491, %v492
        %v494 = vsel %vm280, %v481, -inf
        %v495 = vsel %vm280, %v482, -inf
        %v496 = vmax.f32 %v494, %v495
        %v497 = vrot.slane %v496, 4
        %v498 = vmax.f32 %v496, %v497
        %v499 = vrot.slane %v498, 2
        %v500 = vmax.f32 %v498, %v499
        %v501 = vrot.slane %v500, 1
        %v502 = vmax.f32 %v500, %v501
        %504 = vrot.lane.b32.xlu0 %v502, 64
        %v505 = vpop.permute.xlu0 %504
        %v507 = vsel %vm280, %v493, %v505
        %v508 = vld [vmem:[%s5] sm:$0xff]
        %v509 = vld [vmem:[%s5 + $0x8] sm:$0xff]
        %v510 = vld [vmem:[%s5 + $0x10] sm:$0xff]
        %v511 = vld [vmem:[%s5 + $0x18] sm:$0xff]
        %v512 = vld [vmem:[%s5 + $0x20] sm:$0xff]
        %v513 = vld [vmem:[%s5 + $0x28] sm:$0xff]
        %v514 = vld [vmem:[%s5 + $0x30] sm:$0xff]
        %v515 = vld [vmem:[%s5 + $0x38] sm:$0xff]
        %v516 = vld [vmem:[%s5 + $0x40] sm:$0xff]
        %v517 = vld [vmem:[%s5 + $0x48] sm:$0xff]
        %v518 = vld [vmem:[%s5 + $0x50] sm:$0xff]
        %v519 = vld [vmem:[%s5 + $0x58] sm:$0xff]
        %v520 = vld [vmem:[%s5 + $0x60] sm:$0xff]
        %v521 = vld [vmem:[%s5 + $0x68] sm:$0xff]
        %v522 = vld [vmem:[%s5 + $0x70] sm:$0xff]
        %v523 = vld [vmem:[%s5 + $0x78] sm:$0xff]
        %s524 = sld [smem:[#allocation2]]
        %v525 = vstv %s524
        %526 = vmatprep.subr.mxu0 0.0
        %527 = vmatpush1.msra.mxu0 %v508
        %528 = vmatprep.subr.mxu0 0.0
        %529 = vmatpush1.msra.mxu0 %v509
        %530 = vmatprep.subr.mxu0 0.0
        %531 = vmatpush1.msra.mxu0 %v510
        %532 = vmatprep.subr.mxu0 0.0
        %533 = vmatpush1.msra.mxu0 %v511
        %534 = vmatprep.subr.mxu0 0.0
        %535 = vmatpush1.msra.mxu0 %v512
        %536 = vmatprep.subr.mxu0 0.0
        %537 = vmatpush1.msra.mxu0 %v513
        %538 = vmatprep.subr.mxu0 0.0
        %539 = vmatpush1.msra.mxu0 %v514
        %540 = vmatprep.subr.mxu0 0.0
        %541 = vmatpush1.msra.mxu0 %v515
        %542 = vmatprep.subr.mxu0 0.0
        %543 = vmatpush1.msra.mxu0 %v516
        %544 = vmatprep.subr.mxu0 0.0
        %545 = vmatpush1.msra.mxu0 %v517
        %546 = vmatprep.subr.mxu0 0.0
        %547 = vmatpush1.msra.mxu0 %v518
        %548 = vmatprep.subr.mxu0 0.0
        %549 = vmatpush1.msra.mxu0 %v519
        %550 = vmatprep.subr.mxu0 0.0
        %551 = vmatpush1.msra.mxu0 %v520
        %552 = vmatprep.subr.mxu0 0.0
        %553 = vmatpush1.msra.mxu0 %v521
        %554 = vmatprep.subr.mxu0 0.0
        %555 = vmatpush1.msra.mxu0 %v522
        %556 = vmatprep.subr.mxu0 0.0
        %557 = vmatpush1.msra.mxu0 %v523
        %558 = vmatprep.subr.mxu0 0.0
        %559 = vmatpush1.msra.mxu0 0.0
        %560 = vmatprep.subr.mxu0 0.0
        %561 = vmatpush1.msra.mxu0 0.0
        %562 = vmatprep.subr.mxu0 0.0
        %563 = vmatpush1.msra.mxu0 0.0
        %564 = vmatprep.subr.mxu0 0.0
        %565 = vmatpush1.msra.mxu0 0.0
        %566 = vmatprep.subr.mxu0 0.0
        %567 = vmatpush1.msra.mxu0 0.0
        %568 = vmatprep.subr.mxu0 0.0
        %569 = vmatpush1.msra.mxu0 0.0
        %570 = vmatprep.subr.mxu0 0.0
        %571 = vmatpush1.msra.mxu0 0.0
        %572 = vmatprep.subr.mxu0 0.0
        %573 = vmatpush1.msra.mxu0 0.0
        %574 = vmatprep.subr.mxu0 0.0
        %575 = vmatpush1.msra.mxu0 0.0
        %576 = vmatprep.subr.mxu0 0.0
        %577 = vmatpush1.msra.mxu0 0.0
        %578 = vmatprep.subr.mxu0 0.0
        %579 = vmatpush1.msra.mxu0 0.0
        %580 = vmatprep.subr.mxu0 0.0
        %581 = vmatpush1.msra.mxu0 0.0
        %582 = vmatprep.subr.mxu0 0.0
        %583 = vmatpush1.msra.mxu0 0.0
        %584 = vmatprep.subr.mxu0 0.0
        %585 = vmatpush1.msra.mxu0 0.0
        %586 = vmatprep.subr.mxu0 0.0
        %587 = vmatpush1.msra.mxu0 0.0
        %588 = vmatprep.subr.mxu0 0.0
        %589 = vmatpush1.msra.mxu0 0.0
        %590 = vmatprep.mubr.f32.mxu0 0.0
        %591 = vmatmul.mubr.f32.gmra.mrb[0].mxu0 %v507
        %v592 = vpop.f32.mrb[0].mxu0
        %v593 = vadd.f32 %v525, %v592
        %v594 = vpop.f32.mrb[0].mxu0
        %595 = vdwg.mxu0
        %v596 = vmul.f32 %v593, 0.5
        %v597 = vtanh.pop %v596
        %v598 = vmul.f32 %v597, 0.5
        %v599 = vadd.f32 %v598, 0.5
        %v600 = vlaneseq
        %v601 = vshrl.u32 %v600, 7
        %v602 = vsub.s32 0, %v601
        %v603 = vrot.slane %v599, %v602
        %v604 = vmul.f32 %v481, %v603
        %v605 = vmul.f32 %v482, %v603
        %606 = vst.msk [vmem:[%s272] sm:$0xff] %vm280, %v604
        %607 = vst.msk [vmem:[%s272 + $0x8] sm:$0xff] %vm280, %v605
        %s608 = sand.u32 %s182, 1
        %s609 = scalar_lea.sflag [#allocation4], %s608
        %s610 = sand.u32 %s182, 1
        %s611 = smul.addr %s610, 16
        %s612 = scalar_lea.vmem [#allocation3], %s611
        // Predicated region
        $region49: #{tpu_custom_call.1} parent=47 // pred_check
          %p613 = pneg %p192
        $region50: #{tpu_custom_call.1} parent=47 // pred_check_branch
          %615 = sbr.rel (%p613) target = $region52
        $region51: #{tpu_custom_call.1} parent=47 // pred_region
          %s617 = ssub.s32 256, 256
          %618 = vsyncadd %s609, %s617
          %s619 = smul.addr %s22, 2
          %s620 = smul.addr %s619, 128
          %s621 = scalar_lea.hbm %s7, %s620
          %s622 = sshll.u32 %s612, 4
          %s623 = int_to_ptr.vmem [resolvable:$true] %s622
          %628 = dma.vmem_to_hbm [thread:$0]  %s623, 256, %s621, %s609, 128, 128, 8
        $region52: #{tpu_custom_call.1} parent=47 // pred_fallthru
          _
      $region48: #{tpu_custom_call.1} parent=5 // pred_fallthru
        _
      %p629 = scmp.le.s32.totalorder 2, %s17
      // Predicated region
      $region53: #{tpu_custom_call.1} parent=5 // pred_check
        %p630 = pneg %p629
      $region54: #{tpu_custom_call.1} parent=5 // pred_check_branch
        %632 = sbr.rel (%p630) target = $region56
      $region55: #{tpu_custom_call.1} parent=5 // pred_region
        %s633 = ssub.s32 %s17, 2
        // Predicated region
        $region57: #{tpu_custom_call.1} parent=55 // pred_check
          %p634 = pneg %p198
        $region58: #{tpu_custom_call.1} parent=55 // pred_check_branch
          %636 = sbr.rel (%p634) target = $region60
        $region59: #{tpu_custom_call.1} parent=55 // pred_region
          %s637 = sand.u32 %s183, 1
          %s638 = scalar_lea.sflag [#allocation4], %s637
          %s639 = sand.u32 %s183, 1
          %s640 = smul.addr %s639, 16
          %s641 = scalar_lea.vmem [#allocation3], %s640
          %642 = dma.done %s638, 256
        $region60: #{tpu_custom_call.1} parent=55 // pred_fallthru
          _
      $region56: #{tpu_custom_call.1} parent=5 // pred_fallthru
        _
    $region6: #{tpu_custom_call.1} parent=1 // loop_footer
      %s21 = sadd.s32 1, %s17
    $region7: #{tpu_custom_call.1} parent=1 // loop_footer_branch
      %16 = sbr.rel target = $region3
    $region8: #{tpu_custom_call.1} parent=1 // loop_exit
      _
    %643 = vsyncpa [#allocation4], 1
    %s644 = scalar_lea.sflag [#allocation4], 1
    %645 = vsyncpa %s644, 1

</llo_original>
